<compile_context>
chip_gen: v6e
topology: v6e:2x2x1
jax: 0.10.0
libtpu: 0.0.40
codegen_flags: <defaults>
</compile_context>

<pallas_src>
import functools
import math

import jax
import jax.numpy as jnp
from jax import lax
from jax.experimental import pallas as pl
from jax.experimental.pallas import tpu as pltpu


def _frag_attention_kernel(keep_ref, exp_ref, x_ref, out_ref, *, TB, S, D, G):
    # keep_ref: (TB, S)    1.0 where position kept (~src_mask), 0.0 where padded
    # exp_ref:  (TB, TB*D) one-hot batch -> lane-group expansion (grid-invariant)
    # x_ref:    (S, TB*D)  TB batch elements, seq-major, lanes = (batch, feature)
    # out_ref:  (TB, G, 2*D)
    f32 = jnp.float32

    # Prefix/total selection weights built in-kernel (tiny, ~KB):
    #   rows 0..G-1 select s <= g (prefix), row G selects everything (total).
    g_id = lax.broadcasted_iota(jnp.int32, (G + 1, S), 0)
    s_id = lax.broadcasted_iota(jnp.int32, (G + 1, S), 1)
    w = jnp.where((s_id <= g_id) | (g_id == G),
                  jnp.float32(1.0), jnp.float32(0.0))              # (G+1, S)

    # keep_b[s, c] = keep[c // D, s]: lane-broadcast of the per-batch keep mask,
    # realized as one small exact 0/1 matmul (contract the TB dim of both).
    keep_b = lax.dot_general(
        keep_ref[...], exp_ref[...],
        dimension_numbers=(((0,), (0,)), ((), ())),
        preferred_element_type=f32)                                # (S, TB*D)

    # Fold the padding mask into the activations, then ONE big MXU matmul.
    xm = x_ref[...].astype(f32) * keep_b                           # (S, TB*D)
    p = jnp.dot(w, xm, preferred_element_type=f32)                 # (G+1, TB*D)

    left = p[:G, :]                                                # prefix sums
    right = p[G:G + 1, :] - left                                   # suffix = total - prefix

    # Epilogue: per-batch (G, D) slabs into the (B, G, 2D) layout.  Lane slices
    # and stores are 128-aligned whenever D % 128 == 0 (unmasked vst).
    for t in range(TB):
        sl = slice(t * D, (t + 1) * D)
        out_ref[t, :, :D] = left[:, sl].astype(out_ref.dtype)
        out_ref[t, :, D:] = right[:, sl].astype(out_ref.dtype)


def _lcm(a, b):
    return a * b // math.gcd(a, b)


def _round_up(a, b):
    return -(-a // b) * b


def _vmem_limit_bytes():
    """Per-generation scoped-VMEM limit: ~75% of physical (48 MiB on v7x,
    96 MiB on v5e/v6e); conservative 48 MiB if the query is unavailable."""
    cap = 64 * 1024 * 1024
    try:
        info = pltpu.get_tpu_info()
        cap = int(getattr(info, "vmem_capacity_bytes", cap))
    except Exception:
        pass
    return min(int(cap * 3 // 4), 100 * 1024 * 1024)


def _pick_tiling(B, S, D, itemsize, vmem_budget):
    """Pick the batch tile TB (multiple of 8 and of the lane-alignment unit so
    (TB*D) % 128 == 0) and the padded batch size.  Targets >= ~4K lanes per
    grid step to amortize per-step pipeline overhead while keeping the
    double-buffered working set within the VMEM budget.  Never falls back to a
    single whole-batch block; instead the batch is padded up to TB."""
    G = S - 1
    Bc = max(B, 1)
    lane_unit = 128 // math.gcd(D, 128)
    tb_unit = _lcm(8, lane_unit)
    cap = max(tb_unit, min(64, _round_up(Bc, tb_unit)))
    target_lanes = 4096

    def vmem_use(tb):
        io = 2 * itemsize * tb * (S * D + G * 2 * D) + 2 * 4 * tb * S  # dbl-buffered blocks
        exp = 2 * 4 * tb * tb * D                                      # expansion matrix
        tmp = 4 * 4 * tb * S * D                                       # keep_b, xm, p, temps
        return io + exp + tmp

    tb = tb_unit
    best = tb_unit
    while tb <= cap and vmem_use(tb) <= vmem_budget:
        best = tb
        if tb * D >= target_lanes:
            break
        tb += tb_unit
    tb = best

    if Bc % tb != 0:
        # Prefer a tile that divides B exactly (avoids padding x in HBM) when
        # it is not much smaller than the unconstrained choice.
        divisors = [t for t in range(tb_unit, tb + 1, tb_unit) if Bc % t == 0]
        if divisors and 2 * divisors[-1] >= tb:
            tb = divisors[-1]

    b_pad = _round_up(Bc, tb)
    return tb, b_pad


def frag_attention(x, src_mask):
    """x: (S, B, D) float, src_mask: (B, S) bool (True = padding).
    Returns (B, S-1, 2*D), matching FragAttention(max_length=S).forward.
    Accumulation is in f32; right = total - left (fine at f32/1e-4 tolerance)."""
    S, B, D = x.shape
    assert S >= 2, "FragAttention needs S >= 2 (G = S - 1 fragment positions)"
    G = S - 1
    dtype = x.dtype
    itemsize = jnp.dtype(dtype).itemsize

    vmem_limit = _vmem_limit_bytes()
    TB, B_pad = _pick_tiling(B, S, D, itemsize, vmem_budget=int(vmem_limit * 0.6))

    keep = jnp.logical_not(src_mask).astype(jnp.float32)            # (B, S)
    if B_pad != B:
        x = jnp.pad(x, ((0, 0), (0, B_pad - B), (0, 0)))
        keep = jnp.pad(keep, ((0, B_pad - B), (0, 0)))               # padded rows fully masked
    x_flat = x.reshape(S, B_pad * D)                                 # free minor-dim merge

    # One-hot batch -> lane-group expansion (grid-invariant, stays resident):
    # expand[t, c] = 1 iff lane c belongs to tile-local batch t.
    t_id = jnp.arange(TB, dtype=jnp.int32)[:, None]
    c_id = jnp.arange(TB * D, dtype=jnp.int32)[None, :]
    expand = ((c_id // D) == t_id).astype(jnp.float32)               # (TB, TB*D)

    kernel = functools.partial(_frag_attention_kernel, TB=TB, S=S, D=D, G=G)

    out = pl.pallas_call(
        kernel,
        out_shape=jax.ShapeDtypeStruct((B_pad, G, 2 * D), dtype),
        grid=(B_pad // TB,),
        in_specs=[
            pl.BlockSpec((TB, S), lambda b: (b, 0)),                 # keep, per batch tile
            pl.BlockSpec((TB, TB * D), lambda b: (0, 0)),            # expansion, resident
            pl.BlockSpec((S, TB * D), lambda b: (0, b)),             # TB batches of x per step
        ],
        out_specs=pl.BlockSpec((TB, G, 2 * D), lambda b: (b, 0, 0)),
        compiler_params=pltpu.CompilerParams(
            dimension_semantics=("parallel",),
            vmem_limit_bytes=vmem_limit,
        ),
    )(keep, expand, x_flat)

    return out[:B] if B_pad != B else out


def frag_attention_ref(x, src_mask):
    """Pure-JAX reference mirroring the PyTorch module."""
    S, B, D = x.shape
    G = S - 1
    xb = jnp.transpose(x, (1, 0, 2))                                 # (B, S, D)
    s_ids = jnp.arange(S)[None, :]
    g_ids = jnp.arange(G)[:, None]
    left_excl = s_ids >= g_ids + 1                                   # exclude s > g
    right_excl = s_ids <= g_ids                                      # exclude s <= g
    nm = src_mask[:, None, :]
    left_keep = ~(nm | left_excl[None])                              # (B, G, S)
    right_keep = ~(nm | right_excl[None])                            # (B, G, S)
    xe = xb[:, None, :, :]                                           # (B, 1, S, D)
    left = jnp.sum(xe * left_keep[..., None].astype(x.dtype), axis=2)
    right = jnp.sum(xe * right_keep[..., None].astype(x.dtype), axis=2)
    return jnp.concatenate([left, right], axis=2)


def _run_case(key, S, B, D):
    kx, kl = jax.random.split(key)
    x = jax.random.normal(kx, (S, B, D), dtype=jnp.float32)
    lengths = jax.random.randint(kl, (B,), 1, S + 1)
    src_mask = jnp.arange(S)[None, :] >= lengths[:, None]            # (B, S) bool
    out = jax.block_until_ready(frag_attention(x, src_mask))
    ref = frag_attention_ref(x, src_mask)
    assert out.shape == (B, S - 1, 2 * D), out.shape
    assert jnp.allclose(out, ref, atol=1e-4, rtol=1e-4), f"mismatch (S={S}, B={B}, D={D})"


if __name__ == "__main__":
    key = jax.random.PRNGKey(0)
    k1, k2, k3 = jax.random.split(key, 3)
    _run_case(k1, S=8, B=2, D=32)     # tiny config; batch padded up to the 8-row tile
    _run_case(k2, S=8, B=10, D=32)    # non-divisible batch -> padding path
    _run_case(k3, S=12, B=64, D=128)  # lane-aligned D, multi-step (2-tile) grid
    print("KERNEL_OK")
</pallas_src>

<mosaic_0001>
module attributes {stable_mosaic.version = 11 : i64} {
  func.func @_frag_attention_kernel(%arg0: i32, %arg1: memref<8x8xf32, #tpu.memory_space<vmem>>, %arg2: memref<8x256xf32, #tpu.memory_space<vmem>>, %arg3: memref<8x256xf32, #tpu.memory_space<vmem>>, %arg4: memref<8x7x64xf32, #tpu.memory_space<vmem>>) attributes {dimension_semantics = [#tpu.dimension_semantics<parallel>], iteration_bounds = array<i64: 1>, scalar_prefetch = 0 : i64, scratch_operands = 0 : i64, tpu.core_type = #tpu.core_type<tc>, window_params = [{transform_indices = @transform_0, window_bounds = array<i64: 8, 8>}, {pipeline_mode = #tpu.pipeline_mode<synchronous>, transform_indices = @transform_1, window_bounds = array<i64: 8, 256>}, {transform_indices = @transform_2, window_bounds = array<i64: 8, 256>}, {transform_indices = @transform_3, window_bounds = array<i64: 8, 7, 64>}]} {
    %0 = tpu.iota {dimensions = array<i32: 0>} : vector<8x8xi32>
    %1 = tpu.iota {dimensions = array<i32: 1>} : vector<8x8xi32>
    %2 = arith.cmpi sle, %1, %0 : vector<8x8xi32>
    %c7_i32 = arith.constant 7 : i32
    %3 = vector.broadcast %c7_i32 : i32 to vector<8x8xi32>
    %4 = arith.cmpi eq, %0, %3 : vector<8x8xi32>
    %5 = arith.ori %2, %4 : vector<8x8xi1>
    %cst = arith.constant 1.000000e+00 : f32
    %cst_0 = arith.constant 0.000000e+00 : f32
    %6 = vector.broadcast %cst : f32 to vector<8x8xf32>
    %7 = vector.broadcast %cst_0 : f32 to vector<8x8xf32>
    %8 = arith.select %5, %6, %7 : vector<8x8xi1>, vector<8x8xf32>
    %c0 = arith.constant 0 : index
    %c0_1 = arith.constant 0 : index
    %9 = vector.load %arg1[%c0, %c0_1] : memref<8x8xf32, #tpu.memory_space<vmem>>, vector<8x8xf32>
    %c0_2 = arith.constant 0 : index
    %c0_3 = arith.constant 0 : index
    %10 = vector.load %arg2[%c0_2, %c0_3] : memref<8x256xf32, #tpu.memory_space<vmem>>, vector<8x256xf32>
    %cst_4 = arith.constant dense<0.000000e+00> : vector<8x256xf32>
    %11 = tpu.matmul %9, %10, %cst_4 {dimension_numbers = #tpu.dot_dimension_numbers<[0], [0], [1], [1], [0, 1, 1, 1], [], []>} : vector<8x8xf32>, vector<8x256xf32>, vector<8x256xf32> -> vector<8x256xf32>
    %c0_5 = arith.constant 0 : index
    %c0_6 = arith.constant 0 : index
    %12 = vector.load %arg3[%c0_5, %c0_6] : memref<8x256xf32, #tpu.memory_space<vmem>>, vector<8x256xf32>
    %13 = arith.mulf %12, %11 : vector<8x256xf32>
    %cst_7 = arith.constant dense<0.000000e+00> : vector<8x256xf32>
    %14 = tpu.matmul %8, %13, %cst_7 {dimension_numbers = #tpu.dot_dimension_numbers<[1], [0], [0], [1], [0, 0, 1, 1], [], []>} : vector<8x8xf32>, vector<8x256xf32>, vector<8x256xf32> -> vector<8x256xf32>
    %15 = vector.extract_strided_slice %14 {offsets = [0, 0], sizes = [7, 256], strides = [1, 1]} : vector<8x256xf32> to vector<7x256xf32>
    %16 = vector.extract_strided_slice %14 {offsets = [7, 0], sizes = [1, 256], strides = [1, 1]} : vector<8x256xf32> to vector<1x256xf32>
    %17 = vector.broadcast %16 : vector<1x256xf32> to vector<7x256xf32>
    %18 = arith.subf %17, %15 : vector<7x256xf32>
    %19 = vector.extract_strided_slice %15 {offsets = [0, 0], sizes = [7, 32], strides = [1, 1]} : vector<7x256xf32> to vector<7x32xf32>
    %c0_8 = arith.constant 0 : index
    %c0_9 = arith.constant 0 : index
    %c0_10 = arith.constant 0 : index
    %20 = vector.load %arg4[%c0_8, %c0_9, %c0_10] : memref<8x7x64xf32, #tpu.memory_space<vmem>>, vector<1x7x32xf32>
    %21 = vector.shape_cast %20 : vector<1x7x32xf32> to vector<7x32xf32>
    %22 = vector.shape_cast %19 : vector<7x32xf32> to vector<1x7x32xf32>
    tpu.vector_store %arg4[%c0_8, %c0_9, %c0_10], %22 {strides = array<i32>} : memref<8x7x64xf32, #tpu.memory_space<vmem>>, vector<1x7x32xf32>,
    %23 = vector.extract_strided_slice %18 {offsets = [0, 0], sizes = [7, 32], strides = [1, 1]} : vector<7x256xf32> to vector<7x32xf32>
    %c0_11 = arith.constant 0 : index
    %c0_12 = arith.constant 0 : index
    %c32 = arith.constant 32 : index
    %24 = vector.load %arg4[%c0_11, %c0_12, %c32] : memref<8x7x64xf32, #tpu.memory_space<vmem>>, vector<1x7x32xf32>
    %25 = vector.shape_cast %24 : vector<1x7x32xf32> to vector<7x32xf32>
    %26 = vector.shape_cast %23 : vector<7x32xf32> to vector<1x7x32xf32>
    tpu.vector_store %arg4[%c0_11, %c0_12, %c32], %26 {strides = array<i32>} : memref<8x7x64xf32, #tpu.memory_space<vmem>>, vector<1x7x32xf32>,
    %27 = vector.extract_strided_slice %15 {offsets = [0, 32], sizes = [7, 32], strides = [1, 1]} : vector<7x256xf32> to vector<7x32xf32>
    %c1 = arith.constant 1 : index
    %c0_13 = arith.constant 0 : index
    %c0_14 = arith.constant 0 : index
    %28 = vector.load %arg4[%c1, %c0_13, %c0_14] : memref<8x7x64xf32, #tpu.memory_space<vmem>>, vector<1x7x32xf32>
    %29 = vector.shape_cast %28 : vector<1x7x32xf32> to vector<7x32xf32>
    %30 = vector.shape_cast %27 : vector<7x32xf32> to vector<1x7x32xf32>
    tpu.vector_store %arg4[%c1, %c0_13, %c0_14], %30 {strides = array<i32>} : memref<8x7x64xf32, #tpu.memory_space<vmem>>, vector<1x7x32xf32>,
    %31 = vector.extract_strided_slice %18 {offsets = [0, 32], sizes = [7, 32], strides = [1, 1]} : vector<7x256xf32> to vector<7x32xf32>
    %c1_15 = arith.constant 1 : index
    %c0_16 = arith.constant 0 : index
    %c32_17 = arith.constant 32 : index
    %32 = vector.load %arg4[%c1_15, %c0_16, %c32_17] : memref<8x7x64xf32, #tpu.memory_space<vmem>>, vector<1x7x32xf32>
    %33 = vector.shape_cast %32 : vector<1x7x32xf32> to vector<7x32xf32>
    %34 = vector.shape_cast %31 : vector<7x32xf32> to vector<1x7x32xf32>
    tpu.vector_store %arg4[%c1_15, %c0_16, %c32_17], %34 {strides = array<i32>} : memref<8x7x64xf32, #tpu.memory_space<vmem>>, vector<1x7x32xf32>,
    %35 = vector.extract_strided_slice %15 {offsets = [0, 64], sizes = [7, 32], strides = [1, 1]} : vector<7x256xf32> to vector<7x32xf32>
    %c2 = arith.constant 2 : index
    %c0_18 = arith.constant 0 : index
    %c0_19 = arith.constant 0 : index
    %36 = vector.load %arg4[%c2, %c0_18, %c0_19] : memref<8x7x64xf32, #tpu.memory_space<vmem>>, vector<1x7x32xf32>
    %37 = vector.shape_cast %36 : vector<1x7x32xf32> to vector<7x32xf32>
    %38 = vector.shape_cast %35 : vector<7x32xf32> to vector<1x7x32xf32>
    tpu.vector_store %arg4[%c2, %c0_18, %c0_19], %38 {strides = array<i32>} : memref<8x7x64xf32, #tpu.memory_space<vmem>>, vector<1x7x32xf32>,
    %39 = vector.extract_strided_slice %18 {offsets = [0, 64], sizes = [7, 32], strides = [1, 1]} : vector<7x256xf32> to vector<7x32xf32>
    %c2_20 = arith.constant 2 : index
    %c0_21 = arith.constant 0 : index
    %c32_22 = arith.constant 32 : index
    %40 = vector.load %arg4[%c2_20, %c0_21, %c32_22] : memref<8x7x64xf32, #tpu.memory_space<vmem>>, vector<1x7x32xf32>
    %41 = vector.shape_cast %40 : vector<1x7x32xf32> to vector<7x32xf32>
    %42 = vector.shape_cast %39 : vector<7x32xf32> to vector<1x7x32xf32>
    tpu.vector_store %arg4[%c2_20, %c0_21, %c32_22], %42 {strides = array<i32>} : memref<8x7x64xf32, #tpu.memory_space<vmem>>, vector<1x7x32xf32>,
    %43 = vector.extract_strided_slice %15 {offsets = [0, 96], sizes = [7, 32], strides = [1, 1]} : vector<7x256xf32> to vector<7x32xf32>
    %c3 = arith.constant 3 : index
    %c0_23 = arith.constant 0 : index
    %c0_24 = arith.constant 0 : index
    %44 = vector.load %arg4[%c3, %c0_23, %c0_24] : memref<8x7x64xf32, #tpu.memory_space<vmem>>, vector<1x7x32xf32>
    %45 = vector.shape_cast %44 : vector<1x7x32xf32> to vector<7x32xf32>
    %46 = vector.shape_cast %43 : vector<7x32xf32> to vector<1x7x32xf32>
    tpu.vector_store %arg4[%c3, %c0_23, %c0_24], %46 {strides = array<i32>} : memref<8x7x64xf32, #tpu.memory_space<vmem>>, vector<1x7x32xf32>,
    %47 = vector.extract_strided_slice %18 {offsets = [0, 96], sizes = [7, 32], strides = [1, 1]} : vector<7x256xf32> to vector<7x32xf32>
    %c3_25 = arith.constant 3 : index
    %c0_26 = arith.constant 0 : index
    %c32_27 = arith.constant 32 : index
    %48 = vector.load %arg4[%c3_25, %c0_26, %c32_27] : memref<8x7x64xf32, #tpu.memory_space<vmem>>, vector<1x7x32xf32>
    %49 = vector.shape_cast %48 : vector<1x7x32xf32> to vector<7x32xf32>
    %50 = vector.shape_cast %47 : vector<7x32xf32> to vector<1x7x32xf32>
    tpu.vector_store %arg4[%c3_25, %c0_26, %c32_27], %50 {strides = array<i32>} : memref<8x7x64xf32, #tpu.memory_space<vmem>>, vector<1x7x32xf32>,
    %51 = vector.extract_strided_slice %15 {offsets = [0, 128], sizes = [7, 32], strides = [1, 1]} : vector<7x256xf32> to vector<7x32xf32>
    %c4 = arith.constant 4 : index
    %c0_28 = arith.constant 0 : index
    %c0_29 = arith.constant 0 : index
    %52 = vector.load %arg4[%c4, %c0_28, %c0_29] : memref<8x7x64xf32, #tpu.memory_space<vmem>>, vector<1x7x32xf32>
    %53 = vector.shape_cast %52 : vector<1x7x32xf32> to vector<7x32xf32>
    %54 = vector.shape_cast %51 : vector<7x32xf32> to vector<1x7x32xf32>
    tpu.vector_store %arg4[%c4, %c0_28, %c0_29], %54 {strides = array<i32>} : memref<8x7x64xf32, #tpu.memory_space<vmem>>, vector<1x7x32xf32>,
    %55 = vector.extract_strided_slice %18 {offsets = [0, 128], sizes = [7, 32], strides = [1, 1]} : vector<7x256xf32> to vector<7x32xf32>
    %c4_30 = arith.constant 4 : index
    %c0_31 = arith.constant 0 : index
    %c32_32 = arith.constant 32 : index
    %56 = vector.load %arg4[%c4_30, %c0_31, %c32_32] : memref<8x7x64xf32, #tpu.memory_space<vmem>>, vector<1x7x32xf32>
    %57 = vector.shape_cast %56 : vector<1x7x32xf32> to vector<7x32xf32>
    %58 = vector.shape_cast %55 : vector<7x32xf32> to vector<1x7x32xf32>
    tpu.vector_store %arg4[%c4_30, %c0_31, %c32_32], %58 {strides = array<i32>} : memref<8x7x64xf32, #tpu.memory_space<vmem>>, vector<1x7x32xf32>,
    %59 = vector.extract_strided_slice %15 {offsets = [0, 160], sizes = [7, 32], strides = [1, 1]} : vector<7x256xf32> to vector<7x32xf32>
    %c5 = arith.constant 5 : index
    %c0_33 = arith.constant 0 : index
    %c0_34 = arith.constant 0 : index
    %60 = vector.load %arg4[%c5, %c0_33, %c0_34] : memref<8x7x64xf32, #tpu.memory_space<vmem>>, vector<1x7x32xf32>
    %61 = vector.shape_cast %60 : vector<1x7x32xf32> to vector<7x32xf32>
    %62 = vector.shape_cast %59 : vector<7x32xf32> to vector<1x7x32xf32>
    tpu.vector_store %arg4[%c5, %c0_33, %c0_34], %62 {strides = array<i32>} : memref<8x7x64xf32, #tpu.memory_space<vmem>>, vector<1x7x32xf32>,
    %63 = vector.extract_strided_slice %18 {offsets = [0, 160], sizes = [7, 32], strides = [1, 1]} : vector<7x256xf32> to vector<7x32xf32>
    %c5_35 = arith.constant 5 : index
    %c0_36 = arith.constant 0 : index
    %c32_37 = arith.constant 32 : index
    %64 = vector.load %arg4[%c5_35, %c0_36, %c32_37] : memref<8x7x64xf32, #tpu.memory_space<vmem>>, vector<1x7x32xf32>
    %65 = vector.shape_cast %64 : vector<1x7x32xf32> to vector<7x32xf32>
    %66 = vector.shape_cast %63 : vector<7x32xf32> to vector<1x7x32xf32>
    tpu.vector_store %arg4[%c5_35, %c0_36, %c32_37], %66 {strides = array<i32>} : memref<8x7x64xf32, #tpu.memory_space<vmem>>, vector<1x7x32xf32>,
    %67 = vector.extract_strided_slice %15 {offsets = [0, 192], sizes = [7, 32], strides = [1, 1]} : vector<7x256xf32> to vector<7x32xf32>
    %c6 = arith.constant 6 : index
    %c0_38 = arith.constant 0 : index
    %c0_39 = arith.constant 0 : index
    %68 = vector.load %arg4[%c6, %c0_38, %c0_39] : memref<8x7x64xf32, #tpu.memory_space<vmem>>, vector<1x7x32xf32>
    %69 = vector.shape_cast %68 : vector<1x7x32xf32> to vector<7x32xf32>
    %70 = vector.shape_cast %67 : vector<7x32xf32> to vector<1x7x32xf32>
    tpu.vector_store %arg4[%c6, %c0_38, %c0_39], %70 {strides = array<i32>} : memref<8x7x64xf32, #tpu.memory_space<vmem>>, vector<1x7x32xf32>,
    %71 = vector.extract_strided_slice %18 {offsets = [0, 192], sizes = [7, 32], strides = [1, 1]} : vector<7x256xf32> to vector<7x32xf32>
    %c6_40 = arith.constant 6 : index
    %c0_41 = arith.constant 0 : index
    %c32_42 = arith.constant 32 : index
    %72 = vector.load %arg4[%c6_40, %c0_41, %c32_42] : memref<8x7x64xf32, #tpu.memory_space<vmem>>, vector<1x7x32xf32>
    %73 = vector.shape_cast %72 : vector<1x7x32xf32> to vector<7x32xf32>
    %74 = vector.shape_cast %71 : vector<7x32xf32> to vector<1x7x32xf32>
    tpu.vector_store %arg4[%c6_40, %c0_41, %c32_42], %74 {strides = array<i32>} : memref<8x7x64xf32, #tpu.memory_space<vmem>>, vector<1x7x32xf32>,
    %75 = vector.extract_strided_slice %15 {offsets = [0, 224], sizes = [7, 32], strides = [1, 1]} : vector<7x256xf32> to vector<7x32xf32>
    %c7 = arith.constant 7 : index
    %c0_43 = arith.constant 0 : index
    %c0_44 = arith.constant 0 : index
    %76 = vector.load %arg4[%c7, %c0_43, %c0_44] : memref<8x7x64xf32, #tpu.memory_space<vmem>>, vector<1x7x32xf32>
    %77 = vector.shape_cast %76 : vector<1x7x32xf32> to vector<7x32xf32>
    %78 = vector.shape_cast %75 : vector<7x32xf32> to vector<1x7x32xf32>
    tpu.vector_store %arg4[%c7, %c0_43, %c0_44], %78 {strides = array<i32>} : memref<8x7x64xf32, #tpu.memory_space<vmem>>, vector<1x7x32xf32>,
    %79 = vector.extract_strided_slice %18 {offsets = [0, 224], sizes = [7, 32], strides = [1, 1]} : vector<7x256xf32> to vector<7x32xf32>
    %c7_45 = arith.constant 7 : index
    %c0_46 = arith.constant 0 : index
    %c32_47 = arith.constant 32 : index
    %80 = vector.load %arg4[%c7_45, %c0_46, %c32_47] : memref<8x7x64xf32, #tpu.memory_space<vmem>>, vector<1x7x32xf32>
    %81 = vector.shape_cast %80 : vector<1x7x32xf32> to vector<7x32xf32>
    %82 = vector.shape_cast %79 : vector<7x32xf32> to vector<1x7x32xf32>
    tpu.vector_store %arg4[%c7_45, %c0_46, %c32_47], %82 {strides = array<i32>} : memref<8x7x64xf32, #tpu.memory_space<vmem>>, vector<1x7x32xf32>,
    return
  }
  func.func @transform_0(%arg0: i32) -> (i32, i32) {
    %c0_i32 = arith.constant 0 : i32
    %c0_i32_0 = arith.constant 0 : i32
    return %arg0, %c0_i32 : i32, i32
  }
  func.func @transform_1(%arg0: i32) -> (i32, i32) {
    %c0_i32 = arith.constant 0 : i32
    %c0_i32_0 = arith.constant 0 : i32
    %c0_i32_1 = arith.constant 0 : i32
    return %c0_i32, %c0_i32_0 : i32, i32
  }
  func.func @transform_2(%arg0: i32) -> (i32, i32) {
    %c0_i32 = arith.constant 0 : i32
    %c0_i32_0 = arith.constant 0 : i32
    return %c0_i32, %arg0 : i32, i32
  }
  func.func @transform_3(%arg0: i32) -> (i32, i32, i32) {
    %c0_i32 = arith.constant 0 : i32
    %c0_i32_0 = arith.constant 0 : i32
    %c0_i32_1 = arith.constant 0 : i32
    return %arg0, %c0_i32, %c0_i32_0 : i32, i32, i32
  }
}

</mosaic_0001>

<llo_original>
// kernel: tpu_custom_call.1
$region0: #{tpu_custom_call.1}
  #allocation0 [shape = 'u32[]', space=smem, size = 0x4, offset = 0x4, fixed_abs, tag = 'smem constant byte address 0x4 - core index']
  #allocation1 [shape = 'u32[144,128]{1,0:T(1,128)}', space=vmem, size = 0x12000, scoped, tag = 'internal scratch']
  %s0 = inlined_call_operand.hbm [shape: f32[8,8], index: 0, kind: input, shape index: {}]
  %s1 = inlined_call_operand.hbm [shape: f32[8,256], index: 1, kind: input, shape index: {}]
  %s2 = inlined_call_operand.hbm [shape: f32[8,256], index: 2, kind: input, shape index: {}]
  %s3 = inlined_call_operand.vmem [shape: f32[8,7,64], index: 3, kind: output, shape index: {}]
  %s4 = sld [smem:[#allocation0]]
  $region34: #{tpu_custom_call.1} parent=0
    _
  %s6 = ssub.s32 1, %s4
  %s7 = scalar_select 0, %s6, %s4
  $region1: #{tpu_custom_call.1} parent=0
    #allocation2 [shape = 'u8[4096]{0}', space=vmem, size = 0x1000, scoped, tag = 'input window, operand 0, single buffered']
    #allocation3 [shape = 's32[1]{0}', space=sflag, size = 0x4, scoped, tag = 'scoped memory for tpu_custom_call.1']
    #allocation4 [shape = 'u8[8192]{0}', space=vmem, size = 0x2000, scoped, tag = 'input window, operand 1, single buffered']
    #allocation5 [shape = 's32[1]{0}', space=sflag, size = 0x4, scoped, tag = 'scoped memory for tpu_custom_call.1']
    #allocation6 [shape = 'u8[8192]{0}', space=vmem, size = 0x2000, scoped, tag = 'input window, operand 2, single buffered']
    %8 = vsyncpa [#allocation3], 0
    %9 = vsyncpa [#allocation5], 0
    // Predicated region
    $region2: #{tpu_custom_call.1} parent=1 // pred_check
      _
    $region3: #{tpu_custom_call.1} parent=1 // pred_check_branch
      %11 = sbr.rel (0) target = $region5
    $region4: #{tpu_custom_call.1} parent=1 // pred_region
      %s13 = ssub.s32 128, 128
      %14 = vsyncadd [#allocation3], %s13
      %s16 = sshll.u32 [#allocation2], 4
      %s17 = int_to_ptr.vmem [resolvable:$true] %s16
      %19 = dma.hbm_to_vmem [thread:$0]  %s0, 128, %s17, [#allocation3]
    $region5: #{tpu_custom_call.1} parent=1 // pred_fallthru
      _
    // Predicated region
    $region6: #{tpu_custom_call.1} parent=1 // pred_check
      _
    $region7: #{tpu_custom_call.1} parent=1 // pred_check_branch
      %21 = sbr.rel (0) target = $region9
    $region8: #{tpu_custom_call.1} parent=1 // pred_region
      %s23 = ssub.s32 256, 256
      %24 = vsyncadd [#allocation5], %s23
      %s26 = sshll.u32 [#allocation4], 4
      %s27 = int_to_ptr.vmem [resolvable:$true] %s26
      %29 = dma.hbm_to_vmem [thread:$0]  %s1, 256, %s27, [#allocation5]
    $region9: #{tpu_custom_call.1} parent=1 // pred_fallthru
      _
    // Predicated region
    $region10: #{tpu_custom_call.1} parent=1 // pred_check
      _
    $region11: #{tpu_custom_call.1} parent=1 // pred_check_branch
      %31 = sbr.rel (0) target = $region13
    $region12: #{tpu_custom_call.1} parent=1 // pred_region
      %s33 = ssub.s32 256, 256
      %34 = vsyncadd [#allocation5], %s33
      %s36 = sshll.u32 [#allocation6], 4
      %s37 = int_to_ptr.vmem [resolvable:$true] %s36
      %39 = dma.hbm_to_vmem [thread:$0]  %s2, 256, %s37, [#allocation5]
    $region13: #{tpu_custom_call.1} parent=1 // pred_fallthru
      _
    // Predicated region
    $region14: #{tpu_custom_call.1} parent=1 // pred_check
      _
    $region15: #{tpu_custom_call.1} parent=1 // pred_check_branch
      %41 = sbr.rel (0) target = $region17
    $region16: #{tpu_custom_call.1} parent=1 // pred_region
      %42 = dma.done [#allocation3], 128
    $region17: #{tpu_custom_call.1} parent=1 // pred_fallthru
      _
    // Predicated region
    $region18: #{tpu_custom_call.1} parent=1 // pred_check
      _
    $region19: #{tpu_custom_call.1} parent=1 // pred_check_branch
      %44 = sbr.rel (0) target = $region21
    $region20: #{tpu_custom_call.1} parent=1 // pred_region
      %45 = dma.done [#allocation5], 256
    $region21: #{tpu_custom_call.1} parent=1 // pred_fallthru
      _
    // Predicated region
    $region22: #{tpu_custom_call.1} parent=1 // pred_check
      _
    $region23: #{tpu_custom_call.1} parent=1 // pred_check_branch
      %47 = sbr.rel (0) target = $region25
    $region24: #{tpu_custom_call.1} parent=1 // pred_region
      %48 = dma.done [#allocation5], 256
    $region25: #{tpu_custom_call.1} parent=1 // pred_fallthru
      _
    %v49 = vlaneseq
    %v50 = vshrl.u32 %v49, 7
    %v51 = vlaneseq
    %v52 = vand.u32 %v51, 127
    %vm53 = vcmp.le.s32.totalorder %v52, %v50
    %vm54 = vcmp.eq.s32.totalorder %v50, 7
    %vm55 = vmor %vm53, %vm54
    %v56 = vsel %vm55, 1.0, 0.0
    %v57 = vld [vmem:[#allocation2] sm:$0xff]
    %v58 = vld [vmem:[#allocation4] sm:$0xff]
    %v59 = vld [vmem:[#allocation4 + $0x8] sm:$0xff]
    %60 = vxpose.xlu0.b32.start [1/16] %v57, 128
    %61 = vxpose.xlu0.b32.cont [2/16] 0.0, 128
    %62 = vxpose.xlu0.b32.cont [3/16] 0.0, 128
    %63 = vxpose.xlu0.b32.cont [4/16] 0.0, 128
    %64 = vxpose.xlu0.b32.cont [5/16] 0.0, 128
    %65 = vxpose.xlu0.b32.cont [6/16] 0.0, 128
    %66 = vxpose.xlu0.b32.cont [7/16] 0.0, 128
    %67 = vxpose.xlu0.b32.cont [8/16] 0.0, 128
    %68 = vxpose.xlu0.b32.cont [9/16] 0.0, 128
    %69 = vxpose.xlu0.b32.cont [10/16] 0.0, 128
    %70 = vxpose.xlu0.b32.cont [11/16] 0.0, 128
    %71 = vxpose.xlu0.b32.cont [12/16] 0.0, 128
    %72 = vxpose.xlu0.b32.cont [13/16] 0.0, 128
    %73 = vxpose.xlu0.b32.cont [14/16] 0.0, 128
    %74 = vxpose.xlu0.b32.cont [15/16] 0.0, 128
    %75 = vxpose.xlu0.b32.end [16/16] 0.0, 128
    %v76 = vpop.trf.xlu0
    %v77 = vpop.trf.xlu0
    %v78 = vpop.trf.xlu0
    %v79 = vpop.trf.xlu0
    %v80 = vpop.trf.xlu0
    %v81 = vpop.trf.xlu0
    %v82 = vpop.trf.xlu0
    %v83 = vpop.trf.xlu0
    %v84 = vpop.trf.xlu0
    %v85 = vpop.trf.xlu0
    %v86 = vpop.trf.xlu0
    %v87 = vpop.trf.xlu0
    %v88 = vpop.trf.xlu0
    %v89 = vpop.trf.xlu0
    %v90 = vpop.trf.xlu0
    %v91 = vpop.trf.xlu0
    %vm92 = vcmask 64512
    %v94 = vsel %vm92, %v76, 0
    %96 = vmatprep.subr.mxu0 0.0
    %97 = vmatpush1.msra.mxu0 0.0
    %98 = vmatprep.subr.mxu0 0.0
    %99 = vmatpush1.msra.mxu0 0.0
    %100 = vmatprep.subr.mxu0 0.0
    %101 = vmatpush1.msra.mxu0 0.0
    %102 = vmatprep.subr.mxu0 0.0
    %103 = vmatpush1.msra.mxu0 0.0
    %104 = vmatprep.subr.mxu0 0.0
    %105 = vmatpush1.msra.mxu0 0.0
    %106 = vmatprep.subr.mxu0 0.0
    %107 = vmatpush1.msra.mxu0 0.0
    %108 = vmatprep.subr.mxu0 0.0
    %109 = vmatpush1.msra.mxu0 0.0
    %110 = vmatprep.subr.mxu0 0.0
    %111 = vmatpush1.msra.mxu0 0.0
    %112 = vmatprep.subr.mxu0 0.0
    %113 = vmatpush1.msra.mxu0 0.0
    %114 = vmatprep.subr.mxu0 0.0
    %115 = vmatpush1.msra.mxu0 0.0
    %116 = vmatprep.subr.mxu0 0.0
    %117 = vmatpush1.msra.mxu0 0.0
    %118 = vmatprep.subr.mxu0 0.0
    %119 = vmatpush1.msra.mxu0 0.0
    %120 = vmatprep.subr.mxu0 0.0
    %121 = vmatpush1.msra.mxu0 0.0
    %122 = vmatprep.subr.mxu0 0.0
    %123 = vmatpush1.msra.mxu0 0.0
    %124 = vmatprep.subr.mxu0 0.0
    %125 = vmatpush1.msra.mxu0 0.0
    %126 = vmatprep.subr.mxu0 %v59
    %127 = vmatpush1.msra.mxu0 %v58
    %128 = vmatprep.subr.mxu0 0.0
    %129 = vmatpush2.msra.mxu0 0.0
    %130 = vmatprep.subr.mxu0 0.0
    %131 = vmatpush2.msra.mxu0 0.0
    %132 = vmatprep.subr.mxu0 0.0
    %133 = vmatpush2.msra.mxu0 0.0
    %134 = vmatprep.subr.mxu0 0.0
    %135 = vmatpush2.msra.mxu0 0.0
    %136 = vmatprep.subr.mxu0 0.0
    %137 = vmatpush2.msra.mxu0 0.0
    %138 = vmatprep.subr.mxu0 0.0
    %139 = vmatpush2.msra.mxu0 0.0
    %140 = vmatprep.subr.mxu0 0.0
    %141 = vmatpush2.msra.mxu0 0.0
    %142 = vmatprep.subr.mxu0 0.0
    %143 = vmatpush2.msra.mxu0 0.0
    %144 = vmatprep.subr.mxu0 0.0
    %145 = vmatpush2.msra.mxu0 0.0
    %146 = vmatprep.subr.mxu0 0.0
    %147 = vmatpush2.msra.mxu0 0.0
    %148 = vmatprep.subr.mxu0 0.0
    %149 = vmatpush2.msra.mxu0 0.0
    %150 = vmatprep.subr.mxu0 0.0
    %151 = vmatpush2.msra.mxu0 0.0
    %152 = vmatprep.subr.mxu0 0.0
    %153 = vmatpush2.msra.mxu0 0.0
    %154 = vmatprep.subr.mxu0 0.0
    %155 = vmatpush2.msra.mxu0 0.0
    %156 = vmatprep.subr.mxu0 0.0
    %157 = vmatpush2.msra.mxu0 0.0
    %158 = vmatprep.subr.mxu0 0.0
    %159 = vmatpush2.msra.mxu0 0.0
    %160 = vmatprep.mubr.f32.mxu0 0.0
    %161 = vmatmul.mubr.f32.gmra.mxu0 %v94
    %v162 = vpop.f32.mrf.mxu0
    %v163 = vadd.f32 0.0, %v162
    %v164 = vpop.f32.mrf.mxu0
    %v165 = vadd.f32 0.0, %v164
    %166 = vdwg.mxu0
    %v167 = vld [vmem:[#allocation6] sm:$0xff]
    %v168 = vld [vmem:[#allocation6 + $0x8] sm:$0xff]
    %v169 = vmul.f32 %v167, %v163
    %v170 = vmul.f32 %v168, %v165
    %v172 = vsel %vm92, %v56, 0
    %174 = vmatprep.subr.mxu0 0.0
    %175 = vmatpush1.msra.mxu0 0.0
    %176 = vmatprep.subr.mxu0 0.0
    %177 = vmatpush1.msra.mxu0 0.0
    %178 = vmatprep.subr.mxu0 0.0
    %179 = vmatpush1.msra.mxu0 0.0
    %180 = vmatprep.subr.mxu0 0.0
    %181 = vmatpush1.msra.mxu0 0.0
    %182 = vmatprep.subr.mxu0 0.0
    %183 = vmatpush1.msra.mxu0 0.0
    %184 = vmatprep.subr.mxu0 0.0
    %185 = vmatpush1.msra.mxu0 0.0
    %186 = vmatprep.subr.mxu0 0.0
    %187 = vmatpush1.msra.mxu0 0.0
    %188 = vmatprep.subr.mxu0 0.0
    %189 = vmatpush1.msra.mxu0 0.0
    %190 = vmatprep.subr.mxu0 0.0
    %191 = vmatpush1.msra.mxu0 0.0
    %192 = vmatprep.subr.mxu0 0.0
    %193 = vmatpush1.msra.mxu0 0.0
    %194 = vmatprep.subr.mxu0 0.0
    %195 = vmatpush1.msra.mxu0 0.0
    %196 = vmatprep.subr.mxu0 0.0
    %197 = vmatpush1.msra.mxu0 0.0
    %198 = vmatprep.subr.mxu0 0.0
    %199 = vmatpush1.msra.mxu0 0.0
    %200 = vmatprep.subr.mxu0 0.0
    %201 = vmatpush1.msra.mxu0 0.0
    %202 = vmatprep.subr.mxu0 0.0
    %203 = vmatpush1.msra.mxu0 0.0
    %204 = vmatprep.subr.mxu0 %v170
    %205 = vmatpush1.msra.mxu0 %v169
    %206 = vmatprep.subr.mxu0 0.0
    %207 = vmatpush2.msra.mxu0 0.0
    %208 = vmatprep.subr.mxu0 0.0
    %209 = vmatpush2.msra.mxu0 0.0
    %210 = vmatprep.subr.mxu0 0.0
    %211 = vmatpush2.msra.mxu0 0.0
    %212 = vmatprep.subr.mxu0 0.0
    %213 = vmatpush2.msra.mxu0 0.0
    %214 = vmatprep.subr.mxu0 0.0
    %215 = vmatpush2.msra.mxu0 0.0
    %216 = vmatprep.subr.mxu0 0.0
    %217 = vmatpush2.msra.mxu0 0.0
    %218 = vmatprep.subr.mxu0 0.0
    %219 = vmatpush2.msra.mxu0 0.0
    %220 = vmatprep.subr.mxu0 0.0
    %221 = vmatpush2.msra.mxu0 0.0
    %222 = vmatprep.subr.mxu0 0.0
    %223 = vmatpush2.msra.mxu0 0.0
    %224 = vmatprep.subr.mxu0 0.0
    %225 = vmatpush2.msra.mxu0 0.0
    %226 = vmatprep.subr.mxu0 0.0
    %227 = vmatpush2.msra.mxu0 0.0
    %228 = vmatprep.subr.mxu0 0.0
    %229 = vmatpush2.msra.mxu0 0.0
    %230 = vmatprep.subr.mxu0 0.0
    %231 = vmatpush2.msra.mxu0 0.0
    %232 = vmatprep.subr.mxu0 0.0
    %233 = vmatpush2.msra.mxu0 0.0
    %234 = vmatprep.subr.mxu0 0.0
    %235 = vmatpush2.msra.mxu0 0.0
    %236 = vmatprep.subr.mxu0 0.0
    %237 = vmatpush2.msra.mxu0 0.0
    %238 = vmatprep.mubr.f32.mxu0 0.0
    %239 = vmatmul.mubr.f32.gmra.mxu0 %v172
    %v240 = vpop.f32.mrf.mxu0
    %v241 = vadd.f32 0.0, %v240
    %v242 = vpop.f32.mrf.mxu0
    %v243 = vadd.f32 0.0, %v242
    %244 = vdwg.mxu0
    %v245 = vlaneseq
    %v246 = vshrl.u32 %v245, 7
    %v247 = vsub.s32 7, %v246
    %v248 = vrot.slane %v241, %v247
    %v249 = vlaneseq
    %v250 = vshrl.u32 %v249, 7
    %v251 = vsub.s32 7, %v250
    %v252 = vrot.slane %v243, %v251
    %v253 = vsub.f32 %v248, %v241
    %v254 = vsub.f32 %v252, %v243
    %vm255 = vcmask 260096
    %256 = vst.msk [vmem:[%s3] sm:$0x7f] %vm255, %v241
    %258 = vrot.lane.b32.xlu0 %v253, 32
    %v259 = vpop.permute.xlu0 %258
    %vm261 = vcmask 522496
    %262 = vst.msk [vmem:[%s3] sm:$0x7f] %vm261, %v259
    %264 = vrot.lane.b32.xlu0 %v241, 96
    %v265 = vpop.permute.xlu0 %264
    %s267 = scalar_lea.vmem %s3, 8
    %268 = vst.msk [vmem:[%s267] sm:$0x7f] %vm255, %v265
    %269 = vst.msk [vmem:[%s267] sm:$0x7f] %vm261, %v253
    %270 = vrot.lane.b32.xlu0 %v241, 64
    %v271 = vpop.permute.xlu0 %270
    %s273 = scalar_lea.vmem %s3, 16
    %274 = vst.msk [vmem:[%s273] sm:$0x7f] %vm255, %v271
    %275 = vrot.lane.b32.xlu0 %v253, 96
    %v276 = vpop.permute.xlu0 %275
    %278 = vst.msk [vmem:[%s273] sm:$0x7f] %vm261, %v276
    %279 = vrot.lane.b32.xlu0 %v241, 32
    %v280 = vpop.permute.xlu0 %279
    %s282 = scalar_lea.vmem %s3, 24
    %283 = vst.msk [vmem:[%s282] sm:$0x7f] %vm255, %v280
    %284 = vrot.lane.b32.xlu0 %v253, 64
    %v285 = vpop.permute.xlu0 %284
    %287 = vst.msk [vmem:[%s282] sm:$0x7f] %vm261, %v285
    %s288 = scalar_lea.vmem %s3, 32
    %289 = vst.msk [vmem:[%s288] sm:$0x7f] %vm255, %v243
    %291 = vrot.lane.b32.xlu0 %v254, 32
    %v292 = vpop.permute.xlu0 %291
    %294 = vst.msk [vmem:[%s288] sm:$0x7f] %vm261, %v292
    %296 = vrot.lane.b32.xlu0 %v243, 96
    %v297 = vpop.permute.xlu0 %296
    %s299 = scalar_lea.vmem %s3, 40
    %300 = vst.msk [vmem:[%s299] sm:$0x7f] %vm255, %v297
    %301 = vst.msk [vmem:[%s299] sm:$0x7f] %vm261, %v254
    %302 = vrot.lane.b32.xlu0 %v243, 64
    %v303 = vpop.permute.xlu0 %302
    %s305 = scalar_lea.vmem %s3, 48
    %306 = vst.msk [vmem:[%s305] sm:$0x7f] %vm255, %v303
    %307 = vrot.lane.b32.xlu0 %v254, 96
    %v308 = vpop.permute.xlu0 %307
    %310 = vst.msk [vmem:[%s305] sm:$0x7f] %vm261, %v308
    %311 = vrot.lane.b32.xlu0 %v243, 32
    %v312 = vpop.permute.xlu0 %311
    %s314 = scalar_lea.vmem %s3, 56
    %315 = vst.msk [vmem:[%s314] sm:$0x7f] %vm255, %v312
    %316 = vrot.lane.b32.xlu0 %v254, 64
    %v317 = vpop.permute.xlu0 %316
    %319 = vst.msk [vmem:[%s314] sm:$0x7f] %vm261, %v317
    // Predicated region
    $region26: #{tpu_custom_call.1} parent=1 // pred_check
      _
    $region27: #{tpu_custom_call.1} parent=1 // pred_check_branch
      %321 = sbr.rel (0) target = $region29
    $region28: #{tpu_custom_call.1} parent=1 // pred_region
      _
    $region29: #{tpu_custom_call.1} parent=1 // pred_fallthru
      _
    // Predicated region
    $region30: #{tpu_custom_call.1} parent=1 // pred_check
      _
    $region31: #{tpu_custom_call.1} parent=1 // pred_check_branch
      %323 = sbr.rel (0) target = $region33
    $region32: #{tpu_custom_call.1} parent=1 // pred_region
      _
    $region33: #{tpu_custom_call.1} parent=1 // pred_fallthru
      _
    %324 = vsyncpa [#allocation3], 1
    %325 = vsyncpa [#allocation5], 1

</llo_original>
